<compile_context>
chip_gen: v7x
topology: tpu7x:2x2x1
jax: 0.10.0
libtpu: 0.0.40
codegen_flags: <defaults>
</compile_context>

<pallas_src>
import jax
import jax.numpy as jnp
from jax.experimental import pallas as pl
from jax.experimental.pallas import tpu as pltpu


def _round_up(x, m):
    return ((x + m - 1) // m) * m


# --------------------------------------------------------------------------
# Kernel 1: whole weight set resident in VMEM (small / medium F*H).
# --------------------------------------------------------------------------
def _fusion_kernel(img_ref, txt_ref,
                   wi_ref, bi_ref,
                   wt_ref, bt_ref,
                   wa_i_ref, wa_t_ref, ba_ref,
                   wo_f_ref, wo_i_ref, wo_t_ref, bo_ref,
                   out_ref):
    w_dtype = wi_ref.dtype                       # matmul operand dtype (bf16/f32)

    img = img_ref[...].astype(w_dtype)
    txt = txt_ref[...].astype(w_dtype)

    # img_proj = relu(image @ Wi^T + bi)   (Wi passed pre-transposed, H padded)
    ip = jnp.maximum(
        jnp.dot(img, wi_ref[...], preferred_element_type=jnp.float32) + bi_ref[...],
        0.0)
    tp = jnp.maximum(
        jnp.dot(txt, wt_ref[...], preferred_element_type=jnp.float32) + bt_ref[...],
        0.0)

    # attn logit = cat([ip, tp]) @ Wa^T + ba, done as VPU mul + XLU lane reduce
    logit = jnp.sum(ip * wa_i_ref[...] + tp * wa_t_ref[...],
                    axis=-1, keepdims=True) + ba_ref[0]
    a = jax.nn.sigmoid(logit)                    # [tb, 1]

    fused = tp + a * (ip - tp)                   # == a*ip + (1-a)*tp

    # out = cat([fused, ip, tp]) @ Wo^T + bo, accumulated sequentially.
    out = jnp.dot(fused.astype(w_dtype), wo_f_ref[...],
                  preferred_element_type=jnp.float32)
    out = out + jnp.dot(ip.astype(w_dtype), wo_i_ref[...],
                        preferred_element_type=jnp.float32)
    out = out + jnp.dot(tp.astype(w_dtype), wo_t_ref[...],
                        preferred_element_type=jnp.float32)
    out = out + bo_ref[...]

    # F.normalize(out, dim=-1): out * rsqrt(max(sum(out^2), 1e-24))
    sumsq = jnp.sum(out * out, axis=-1, keepdims=True)
    out_ref[...] = out * jax.lax.rsqrt(jnp.maximum(sumsq, 1e-24))


# --------------------------------------------------------------------------
# Kernel 2: output-F tiled (large F*H; v7x 64 MiB per-TC VMEM).
# Grid = (row tiles i, F tiles j).  ip/tp/fused are computed once per row tile
# (j == 0) into VMEM scratch; per-row sumsq accumulates in a resident output.
# --------------------------------------------------------------------------
def _fusion_kernel_fsplit(img_ref, txt_ref,
                          wi_ref, bi_ref,
                          wt_ref, bt_ref,
                          wa_i_ref, wa_t_ref, ba_ref,
                          wo_f_ref, wo_i_ref, wo_t_ref, bo_ref,
                          out_ref, sumsq_ref,
                          ip_s, tp_s, fused_s):
    j = pl.program_id(1)
    w_dtype = wi_ref.dtype

    @pl.when(j == 0)
    def _():
        img = img_ref[...].astype(w_dtype)
        txt = txt_ref[...].astype(w_dtype)
        ip = jnp.maximum(
            jnp.dot(img, wi_ref[...], preferred_element_type=jnp.float32)
            + bi_ref[...], 0.0)
        tp = jnp.maximum(
            jnp.dot(txt, wt_ref[...], preferred_element_type=jnp.float32)
            + bt_ref[...], 0.0)
        logit = jnp.sum(ip * wa_i_ref[...] + tp * wa_t_ref[...],
                        axis=-1, keepdims=True) + ba_ref[0]
        a = jax.nn.sigmoid(logit)
        fused = tp + a * (ip - tp)
        ip_s[...] = ip.astype(w_dtype)
        tp_s[...] = tp.astype(w_dtype)
        fused_s[...] = fused.astype(w_dtype)
        sumsq_ref[...] = jnp.zeros_like(sumsq_ref)

    out = jnp.dot(fused_s[...], wo_f_ref[...], preferred_element_type=jnp.float32)
    out = out + jnp.dot(ip_s[...], wo_i_ref[...], preferred_element_type=jnp.float32)
    out = out + jnp.dot(tp_s[...], wo_t_ref[...], preferred_element_type=jnp.float32)
    out = out + bo_ref[...]

    sumsq_ref[...] += jnp.sum(out * out, axis=-1, keepdims=True)
    out_ref[...] = out          # un-normalized; rescaled in a cheap second pass


# --------------------------------------------------------------------------
# Parameter preparation (one-time, at load time): transpose, split the torch
# cat's algebraically, pad H (and output-F in the split path) to 128 multiples.
# Zero padding is exact: padded ip/tp columns are 0 and padded Wo rows/cols
# are 0, so they contribute nothing to the logit, the output, or the norm.
# --------------------------------------------------------------------------
def prepare_params(params, compute_dtype=jnp.bfloat16, *, split_f=None, tn=512):
    H, F_in = params["wi"].shape                 # torch Linear weight: (out, in)
    F_out = params["wo"].shape[0]
    Hp = _round_up(H, 128)
    w_bytes = jnp.dtype(compute_dtype).itemsize

    if split_f is None:
        # Whole-weight-resident only while it comfortably fits per-core VMEM
        # (v7x: 64 MiB per TensorCore, minus IO buffers / intermediates).
        split_f = (2 * F_in * Hp + 3 * Hp * F_out) * w_bytes > (40 << 20)

    if split_f:
        tn = max(128, _round_up(min(tn, _round_up(F_out, 128)), 128))
        Fp = _round_up(F_out, tn)
    else:
        tn = None
        Fp = F_out

    def padded(x, rows, cols, dtype):
        x = jnp.asarray(x, jnp.float32)
        x = jnp.pad(x, ((0, rows - x.shape[0]), (0, cols - x.shape[1])))
        return x.astype(dtype)

    wa = jnp.asarray(params["wa"])               # [1, 2H]
    wo = jnp.asarray(params["wo"])               # [F_out, 3H]

    return {
        "wi_t":   padded(jnp.asarray(params["wi"]).T, F_in, Hp, compute_dtype),
        "wt_t":   padded(jnp.asarray(params["wt"]).T, F_in, Hp, compute_dtype),
        "bi":     padded(jnp.asarray(params["bi"]).reshape(1, H), 1, Hp, jnp.float32),
        "bt":     padded(jnp.asarray(params["bt"]).reshape(1, H), 1, Hp, jnp.float32),
        "wa_i":   padded(wa[:, :H], 1, Hp, jnp.float32),
        "wa_t":   padded(wa[:, H:], 1, Hp, jnp.float32),
        "ba":     jnp.asarray(params["ba"], jnp.float32).reshape(1),   # scalar -> SMEM
        "wo_f_t": padded(wo[:, :H].T, Hp, Fp, compute_dtype),
        "wo_i_t": padded(wo[:, H:2 * H].T, Hp, Fp, compute_dtype),
        "wo_t_t": padded(wo[:, 2 * H:].T, Hp, Fp, compute_dtype),
        "bo":     padded(jnp.asarray(params["bo"]).reshape(1, F_out), 1, Fp, jnp.float32),
        "meta":   dict(split=bool(split_f), tn=tn, hp=Hp, fp=Fp,
                       f_in=F_in, f_out=F_out, w_bytes=w_bytes),
    }


def _pick_tb(B, tb=None):
    if tb is None:
        tb = 512 if B >= 2048 else 256           # bigger tiles amortize per-step overhead
    tb = max(8, _round_up(min(tb, _round_up(B, 8)), 8))
    # v7x megacore: keep >= 2 row programs so both TensorCores get work.
    if B > 128 and pl.cdiv(B, tb) < 2:
        tb = 128
    return tb


def _vmem_limit_bytes(*, tb, f_in, f_out, hp, w_bytes, split, tn=None):
    act = 4                                       # activations / outputs are f32
    if split:
        weights = 2 * f_in * hp * w_bytes         # Wi^T, Wt^T resident
        weights += 3 * hp * tn * w_bytes * 2      # Wo splits, double-buffered
        weights += 2 * tn * act + 5 * hp * act    # bo tile + small biases / wa rows
        io = 2 * 2 * tb * f_in * act              # img/txt tiles, double-buffered
        io += 2 * tb * tn * act + 2 * tb * act    # out + sumsq tiles
        scratch = 3 * tb * hp * w_bytes
        tmp = 4 * tb * max(hp, tn) * act
    else:
        weights = (2 * f_in * hp + 3 * hp * f_out) * w_bytes
        weights += (5 * hp + f_out) * act
        io = 2 * 2 * tb * f_in * act + 2 * tb * f_out * act
        scratch = 0
        tmp = 4 * tb * max(hp, f_out) * act
    total = int((weights + io + scratch + tmp) * 1.3) + (4 << 20)   # headroom
    return max(32 << 20, min(total, 112 << 20))


# --------------------------------------------------------------------------
# Wrapper
# --------------------------------------------------------------------------
def attention_fusion_combiner(image_features, text_features, prep, *, tb=None):
    B, F_in = image_features.shape
    meta = prep["meta"]
    assert F_in == meta["f_in"] and text_features.shape == (B, F_in)
    Hp, F_out, Fp = meta["hp"], meta["f_out"], meta["fp"]
    w_bytes = meta["w_bytes"]

    tb = _pick_tb(B, tb)
    n_rows = pl.cdiv(B, tb)                       # partial last block is fine: rows are independent
    smem_spec = pl.BlockSpec(memory_space=pltpu.MemorySpace.SMEM)

    if not meta["split"]:
        row_spec = pl.BlockSpec((tb, F_in), lambda i: (i, 0))

        def const(shape):                         # grid-invariant: single buffer
            return pl.BlockSpec(shape, lambda i: (0, 0), pipeline_mode=pl.Buffered(1))

        vmem_limit = _vmem_limit_bytes(tb=tb, f_in=F_in, f_out=F_out, hp=Hp,
                                       w_bytes=w_bytes, split=False)
        out = pl.pallas_call(
            _fusion_kernel,
            out_shape=jax.ShapeDtypeStruct((B, F_out), jnp.float32),
            grid_spec=pltpu.PrefetchScalarGridSpec(
                num_scalar_prefetch=0,
                grid=(n_rows,),
                in_specs=[
                    row_spec, row_spec,                       # image / text rows
                    const((F_in, Hp)), const((1, Hp)),        # Wi^T, bi
                    const((F_in, Hp)), const((1, Hp)),        # Wt^T, bt
                    const((1, Hp)), const((1, Hp)),           # wa img / txt rows
                    smem_spec,                                # ba (scalar, SMEM)
                    const((Hp, F_out)), const((Hp, F_out)), const((Hp, F_out)),
                    const((1, F_out)),                        # bo
                ],
                out_specs=pl.BlockSpec((tb, F_out), lambda i: (i, 0)),
            ),
            compiler_params=pltpu.CompilerParams(
                dimension_semantics=("parallel",),
                vmem_limit_bytes=vmem_limit),
        )(image_features, text_features,
          prep["wi_t"], prep["bi"], prep["wt_t"], prep["bt"],
          prep["wa_i"], prep["wa_t"], prep["ba"],
          prep["wo_f_t"], prep["wo_i_t"], prep["wo_t_t"], prep["bo"])
        return out

    # ---- F-split path (large F*H) ----
    tn = meta["tn"]
    n_f = Fp // tn
    w_dtype = prep["wi_t"].dtype
    row_spec = pl.BlockSpec((tb, F_in), lambda i, j: (i, 0))

    def const(shape):
        return pl.BlockSpec(shape, lambda i, j: (0, 0), pipeline_mode=pl.Buffered(1))

    wo_spec = pl.BlockSpec((Hp, tn), lambda i, j: (0, j))
    bo_spec = pl.BlockSpec((1, tn), lambda i, j: (0, j))
    vmem_limit = _vmem_limit_bytes(tb=tb, f_in=F_in, f_out=F_out, hp=Hp,
                                   w_bytes=w_bytes, split=True, tn=tn)

    out_un, sumsq = pl.pallas_call(
        _fusion_kernel_fsplit,
        out_shape=(jax.ShapeDtypeStruct((B, Fp), jnp.float32),
                   jax.ShapeDtypeStruct((B, 1), jnp.float32)),
        grid_spec=pltpu.PrefetchScalarGridSpec(
            num_scalar_prefetch=0,
            grid=(n_rows, n_f),
            in_specs=[
                row_spec, row_spec,
                const((F_in, Hp)), const((1, Hp)),
                const((F_in, Hp)), const((1, Hp)),
                const((1, Hp)), const((1, Hp)),
                smem_spec,
                wo_spec, wo_spec, wo_spec,
                bo_spec,
            ],
            out_specs=[pl.BlockSpec((tb, tn), lambda i, j: (i, j)),
                       pl.BlockSpec((tb, 1), lambda i, j: (i, 0))],
            scratch_shapes=[pltpu.VMEM((tb, Hp), w_dtype)] * 3,   # ip / tp / fused
        ),
        compiler_params=pltpu.CompilerParams(
            dimension_semantics=("parallel", "arbitrary"),
            vmem_limit_bytes=vmem_limit),
    )(image_features, text_features,
      prep["wi_t"], prep["bi"], prep["wt_t"], prep["bt"],
      prep["wa_i"], prep["wa_t"], prep["ba"],
      prep["wo_f_t"], prep["wo_i_t"], prep["wo_t_t"], prep["bo"])

    # Cheap second pass: L2 normalize (mem-bound elementwise op, fused by XLA).
    out = out_un * jax.lax.rsqrt(jnp.maximum(sumsq, 1e-24))
    return out[:, :F_out] if Fp != F_out else out


# --------------------------------------------------------------------------
# Pure-JAX reference mirroring the PyTorch forward, and a self-check.
# --------------------------------------------------------------------------
def _reference(image_features, text_features, params):
    ip = jax.nn.relu(image_features @ params["wi"].T + params["bi"])
    tp = jax.nn.relu(text_features @ params["wt"].T + params["bt"])
    concat = jnp.concatenate([ip, tp], axis=-1)
    a = jax.nn.sigmoid(concat @ params["wa"].T + params["ba"])
    fused = a * ip + (1 - a) * tp
    combined = jnp.concatenate([fused, concat], axis=-1)
    out = combined @ params["wo"].T + params["bo"]
    norm = jnp.linalg.norm(out, axis=-1, keepdims=True)
    return out / jnp.maximum(norm, 1e-12)


def make_params(key, feature_dim, hidden_dim):
    ks = jax.random.split(key, 8)
    s = 0.1
    return {
        "wi": jax.random.normal(ks[0], (hidden_dim, feature_dim), jnp.float32) * s,
        "bi": jax.random.normal(ks[1], (hidden_dim,), jnp.float32) * s,
        "wt": jax.random.normal(ks[2], (hidden_dim, feature_dim), jnp.float32) * s,
        "bt": jax.random.normal(ks[3], (hidden_dim,), jnp.float32) * s,
        "wa": jax.random.normal(ks[4], (1, 2 * hidden_dim), jnp.float32) * s,
        "ba": jax.random.normal(ks[5], (1,), jnp.float32) * s,
        "wo": jax.random.normal(ks[6], (feature_dim, 3 * hidden_dim), jnp.float32) * s,
        "bo": jax.random.normal(ks[7], (feature_dim,), jnp.float32) * s,
    }


if __name__ == "__main__":
    key = jax.random.PRNGKey(0)
    k1, k2, k3, k4, k5, k6 = jax.random.split(key, 6)

    # --- Test 1: small shapes, f32 weights, whole-weight-resident path -----
    B, F, H = 8, 32, 32                          # projection_dim unused by forward
    img = jax.random.normal(k1, (B, F), jnp.float32)
    txt = jax.random.normal(k2, (B, F), jnp.float32)
    params = make_params(k3, F, H)
    ref = _reference(img, txt, params)

    prep_f32 = prepare_params(params, compute_dtype=jnp.float32)
    out = jax.block_until_ready(attention_fusion_combiner(img, txt, prep_f32))
    assert out.shape == ref.shape
    assert jnp.allclose(out, ref, atol=1e-4, rtol=1e-4), "f32 whole-path mismatch"

    # --- Test 2: default bf16 weights (f32 accumulation), looser tolerance -
    prep_bf16 = prepare_params(params)           # compute_dtype=bf16 default
    out_bf16 = jax.block_until_ready(attention_fusion_combiner(img, txt, prep_bf16))
    assert jnp.allclose(out_bf16, ref, atol=5e-2, rtol=5e-2), "bf16 path mismatch"

    # --- Test 3: F-split path (forced), non-aligned dims, partial row block -
    B2, F2, H2 = 52, 200, 96
    img2 = jax.random.normal(k4, (B2, F2), jnp.float32)
    txt2 = jax.random.normal(k5, (B2, F2), jnp.float32)
    params2 = make_params(k6, F2, H2)
    ref2 = _reference(img2, txt2, params2)

    prep_split = prepare_params(params2, compute_dtype=jnp.float32,
                                split_f=True, tn=128)
    out2 = jax.block_until_ready(attention_fusion_combiner(img2, txt2, prep_split))
    assert out2.shape == ref2.shape
    assert jnp.allclose(out2, ref2, atol=1e-4, rtol=1e-4), "F-split path mismatch"

    print("KERNEL_OK")
</pallas_src>

<mosaic_0001>
module attributes {stable_mosaic.version = 11 : i64} {
  func.func @_fusion_kernel(%arg0: i32, %arg1: memref<8x32xf32, #tpu.memory_space<vmem>>, %arg2: memref<8x32xf32, #tpu.memory_space<vmem>>, %arg3: memref<32x128xf32, #tpu.memory_space<vmem>>, %arg4: memref<1x128xf32, #tpu.memory_space<vmem>>, %arg5: memref<32x128xf32, #tpu.memory_space<vmem>>, %arg6: memref<1x128xf32, #tpu.memory_space<vmem>>, %arg7: memref<1x128xf32, #tpu.memory_space<vmem>>, %arg8: memref<1x128xf32, #tpu.memory_space<vmem>>, %arg9: memref<1xf32, #tpu.memory_space<smem>>, %arg10: memref<128x32xf32, #tpu.memory_space<vmem>>, %arg11: memref<128x32xf32, #tpu.memory_space<vmem>>, %arg12: memref<128x32xf32, #tpu.memory_space<vmem>>, %arg13: memref<1x32xf32, #tpu.memory_space<vmem>>, %arg14: memref<8x32xf32, #tpu.memory_space<vmem>>) attributes {dimension_semantics = [#tpu.dimension_semantics<parallel>], iteration_bounds = array<i64: 1>, scalar_prefetch = 0 : i64, scratch_operands = 0 : i64, tpu.core_type = #tpu.core_type<tc>, window_params = [{transform_indices = @transform_0, window_bounds = array<i64: 8, 32>}, {transform_indices = @transform_1, window_bounds = array<i64: 8, 32>}, {pipeline_mode = #tpu.pipeline_mode<synchronous>, transform_indices = @transform_2, window_bounds = array<i64: 32, 128>}, {pipeline_mode = #tpu.pipeline_mode<synchronous>, transform_indices = @transform_3, window_bounds = array<i64: 1, 128>}, {pipeline_mode = #tpu.pipeline_mode<synchronous>, transform_indices = @transform_4, window_bounds = array<i64: 32, 128>}, {pipeline_mode = #tpu.pipeline_mode<synchronous>, transform_indices = @transform_5, window_bounds = array<i64: 1, 128>}, {pipeline_mode = #tpu.pipeline_mode<synchronous>, transform_indices = @transform_6, window_bounds = array<i64: 1, 128>}, {pipeline_mode = #tpu.pipeline_mode<synchronous>, transform_indices = @transform_7, window_bounds = array<i64: 1, 128>}, {transform_indices = @transform_8, window_bounds = array<i64: 1>}, {pipeline_mode = #tpu.pipeline_mode<synchronous>, transform_indices = @transform_9, window_bounds = array<i64: 128, 32>}, {pipeline_mode = #tpu.pipeline_mode<synchronous>, transform_indices = @transform_10, window_bounds = array<i64: 128, 32>}, {pipeline_mode = #tpu.pipeline_mode<synchronous>, transform_indices = @transform_11, window_bounds = array<i64: 128, 32>}, {pipeline_mode = #tpu.pipeline_mode<synchronous>, transform_indices = @transform_12, window_bounds = array<i64: 1, 32>}, {transform_indices = @transform_13, window_bounds = array<i64: 8, 32>}]} {
    %c0 = arith.constant 0 : index
    %c0_0 = arith.constant 0 : index
    %0 = vector.load %arg1[%c0, %c0_0] : memref<8x32xf32, #tpu.memory_space<vmem>>, vector<8x32xf32>
    %c0_1 = arith.constant 0 : index
    %c0_2 = arith.constant 0 : index
    %1 = vector.load %arg2[%c0_1, %c0_2] : memref<8x32xf32, #tpu.memory_space<vmem>>, vector<8x32xf32>
    %c0_3 = arith.constant 0 : index
    %c0_4 = arith.constant 0 : index
    %2 = vector.load %arg3[%c0_3, %c0_4] : memref<32x128xf32, #tpu.memory_space<vmem>>, vector<32x128xf32>
    %cst = arith.constant dense<0.000000e+00> : vector<8x128xf32>
    %3 = tpu.matmul %0, %2, %cst {dimension_numbers = #tpu.dot_dimension_numbers<[1], [0], [0], [1], [0, 0, 1, 1], [], []>} : vector<8x32xf32>, vector<32x128xf32>, vector<8x128xf32> -> vector<8x128xf32>
    %c0_5 = arith.constant 0 : index
    %c0_6 = arith.constant 0 : index
    %4 = vector.load %arg4[%c0_5, %c0_6] : memref<1x128xf32, #tpu.memory_space<vmem>>, vector<1x128xf32>
    %5 = vector.broadcast %4 : vector<1x128xf32> to vector<8x128xf32>
    %6 = arith.addf %3, %5 : vector<8x128xf32>
    %cst_7 = arith.constant 0.000000e+00 : f32
    %7 = vector.broadcast %cst_7 : f32 to vector<8x128xf32>
    %8 = arith.maximumf %6, %7 : vector<8x128xf32>
    %c0_8 = arith.constant 0 : index
    %c0_9 = arith.constant 0 : index
    %9 = vector.load %arg5[%c0_8, %c0_9] : memref<32x128xf32, #tpu.memory_space<vmem>>, vector<32x128xf32>
    %cst_10 = arith.constant dense<0.000000e+00> : vector<8x128xf32>
    %10 = tpu.matmul %1, %9, %cst_10 {dimension_numbers = #tpu.dot_dimension_numbers<[1], [0], [0], [1], [0, 0, 1, 1], [], []>} : vector<8x32xf32>, vector<32x128xf32>, vector<8x128xf32> -> vector<8x128xf32>
    %c0_11 = arith.constant 0 : index
    %c0_12 = arith.constant 0 : index
    %11 = vector.load %arg6[%c0_11, %c0_12] : memref<1x128xf32, #tpu.memory_space<vmem>>, vector<1x128xf32>
    %12 = vector.broadcast %11 : vector<1x128xf32> to vector<8x128xf32>
    %13 = arith.addf %10, %12 : vector<8x128xf32>
    %cst_13 = arith.constant 0.000000e+00 : f32
    %14 = vector.broadcast %cst_13 : f32 to vector<8x128xf32>
    %15 = arith.maximumf %13, %14 : vector<8x128xf32>
    %c0_14 = arith.constant 0 : index
    %c0_15 = arith.constant 0 : index
    %16 = vector.load %arg7[%c0_14, %c0_15] : memref<1x128xf32, #tpu.memory_space<vmem>>, vector<1x128xf32>
    %17 = vector.broadcast %16 : vector<1x128xf32> to vector<8x128xf32>
    %18 = arith.mulf %8, %17 : vector<8x128xf32>
    %c0_16 = arith.constant 0 : index
    %c0_17 = arith.constant 0 : index
    %19 = vector.load %arg8[%c0_16, %c0_17] : memref<1x128xf32, #tpu.memory_space<vmem>>, vector<1x128xf32>
    %20 = vector.broadcast %19 : vector<1x128xf32> to vector<8x128xf32>
    %21 = arith.mulf %15, %20 : vector<8x128xf32>
    %22 = arith.addf %18, %21 : vector<8x128xf32>
    %cst_18 = arith.constant dense<0.000000e+00> : vector<8xf32>
    %23 = vector.multi_reduction <add>, %22, %cst_18 [1] : vector<8x128xf32> to vector<8xf32>
    %24 = vector.shape_cast %23 : vector<8xf32> to vector<8x1xf32>
    %c0_19 = arith.constant 0 : index
    %25 = memref.load %arg9[%c0_19] : memref<1xf32, #tpu.memory_space<smem>>
    %26 = vector.broadcast %25 : f32 to vector<8x1xf32>
    %27 = arith.addf %24, %26 : vector<8x1xf32>
    %28 = arith.negf %27 : vector<8x1xf32>
    %29 = math.exp %28 : vector<8x1xf32>
    %cst_20 = arith.constant 1.000000e+00 : f32
    %30 = vector.broadcast %cst_20 : f32 to vector<8x1xf32>
    %31 = arith.addf %30, %29 : vector<8x1xf32>
    %32 = arith.divf %30, %31 : vector<8x1xf32>
    %33 = arith.subf %8, %15 : vector<8x128xf32>
    %34 = vector.broadcast %32 : vector<8x1xf32> to vector<8x128xf32>
    %35 = arith.mulf %34, %33 : vector<8x128xf32>
    %36 = arith.addf %15, %35 : vector<8x128xf32>
    %c0_21 = arith.constant 0 : index
    %c0_22 = arith.constant 0 : index
    %37 = vector.load %arg10[%c0_21, %c0_22] : memref<128x32xf32, #tpu.memory_space<vmem>>, vector<128x32xf32>
    %cst_23 = arith.constant dense<0.000000e+00> : vector<8x32xf32>
    %38 = tpu.matmul %36, %37, %cst_23 {dimension_numbers = #tpu.dot_dimension_numbers<[1], [0], [0], [1], [0, 0, 1, 1], [], []>} : vector<8x128xf32>, vector<128x32xf32>, vector<8x32xf32> -> vector<8x32xf32>
    %c0_24 = arith.constant 0 : index
    %c0_25 = arith.constant 0 : index
    %39 = vector.load %arg11[%c0_24, %c0_25] : memref<128x32xf32, #tpu.memory_space<vmem>>, vector<128x32xf32>
    %cst_26 = arith.constant dense<0.000000e+00> : vector<8x32xf32>
    %40 = tpu.matmul %8, %39, %cst_26 {dimension_numbers = #tpu.dot_dimension_numbers<[1], [0], [0], [1], [0, 0, 1, 1], [], []>} : vector<8x128xf32>, vector<128x32xf32>, vector<8x32xf32> -> vector<8x32xf32>
    %41 = arith.addf %38, %40 : vector<8x32xf32>
    %c0_27 = arith.constant 0 : index
    %c0_28 = arith.constant 0 : index
    %42 = vector.load %arg12[%c0_27, %c0_28] : memref<128x32xf32, #tpu.memory_space<vmem>>, vector<128x32xf32>
    %cst_29 = arith.constant dense<0.000000e+00> : vector<8x32xf32>
    %43 = tpu.matmul %15, %42, %cst_29 {dimension_numbers = #tpu.dot_dimension_numbers<[1], [0], [0], [1], [0, 0, 1, 1], [], []>} : vector<8x128xf32>, vector<128x32xf32>, vector<8x32xf32> -> vector<8x32xf32>
    %44 = arith.addf %41, %43 : vector<8x32xf32>
    %c0_30 = arith.constant 0 : index
    %c0_31 = arith.constant 0 : index
    %45 = vector.load %arg13[%c0_30, %c0_31] : memref<1x32xf32, #tpu.memory_space<vmem>>, vector<1x32xf32>
    %46 = vector.broadcast %45 : vector<1x32xf32> to vector<8x32xf32>
    %47 = arith.addf %44, %46 : vector<8x32xf32>
    %48 = arith.mulf %47, %47 : vector<8x32xf32>
    %cst_32 = arith.constant dense<0.000000e+00> : vector<8xf32>
    %49 = vector.multi_reduction <add>, %48, %cst_32 [1] : vector<8x32xf32> to vector<8xf32>
    %50 = vector.shape_cast %49 : vector<8xf32> to vector<8x1xf32>
    %cst_33 = arith.constant 1.000000e-24 : f32
    %51 = vector.broadcast %cst_33 : f32 to vector<8x1xf32>
    %52 = arith.maximumf %50, %51 : vector<8x1xf32>
    %53 = math.rsqrt %52 : vector<8x1xf32>
    %54 = vector.broadcast %53 : vector<8x1xf32> to vector<8x32xf32>
    %55 = arith.mulf %47, %54 : vector<8x32xf32>
    %c0_34 = arith.constant 0 : index
    %c0_35 = arith.constant 0 : index
    %56 = vector.load %arg14[%c0_34, %c0_35] : memref<8x32xf32, #tpu.memory_space<vmem>>, vector<8x32xf32>
    tpu.vector_store %arg14[%c0_34, %c0_35], %55 {strides = array<i32>} : memref<8x32xf32, #tpu.memory_space<vmem>>, vector<8x32xf32>,
    return
  }
  func.func @transform_0(%arg0: i32) -> (i32, i32) {
    %c0_i32 = arith.constant 0 : i32
    %c0_i32_0 = arith.constant 0 : i32
    return %arg0, %c0_i32 : i32, i32
  }
  func.func @transform_1(%arg0: i32) -> (i32, i32) {
    %c0_i32 = arith.constant 0 : i32
    %c0_i32_0 = arith.constant 0 : i32
    return %arg0, %c0_i32 : i32, i32
  }
  func.func @transform_2(%arg0: i32) -> (i32, i32) {
    %c0_i32 = arith.constant 0 : i32
    %c0_i32_0 = arith.constant 0 : i32
    %c0_i32_1 = arith.constant 0 : i32
    return %c0_i32, %c0_i32_0 : i32, i32
  }
  func.func @transform_3(%arg0: i32) -> (i32, i32) {
    %c0_i32 = arith.constant 0 : i32
    %c0_i32_0 = arith.constant 0 : i32
    %c0_i32_1 = arith.constant 0 : i32
    return %c0_i32, %c0_i32_0 : i32, i32
  }
  func.func @transform_4(%arg0: i32) -> (i32, i32) {
    %c0_i32 = arith.constant 0 : i32
    %c0_i32_0 = arith.constant 0 : i32
    %c0_i32_1 = arith.constant 0 : i32
    return %c0_i32, %c0_i32_0 : i32, i32
  }
  func.func @transform_5(%arg0: i32) -> (i32, i32) {
    %c0_i32 = arith.constant 0 : i32
    %c0_i32_0 = arith.constant 0 : i32
    %c0_i32_1 = arith.constant 0 : i32
    return %c0_i32, %c0_i32_0 : i32, i32
  }
  func.func @transform_6(%arg0: i32) -> (i32, i32) {
    %c0_i32 = arith.constant 0 : i32
    %c0_i32_0 = arith.constant 0 : i32
    %c0_i32_1 = arith.constant 0 : i32
    return %c0_i32, %c0_i32_0 : i32, i32
  }
  func.func @transform_7(%arg0: i32) -> (i32, i32) {
    %c0_i32 = arith.constant 0 : i32
    %c0_i32_0 = arith.constant 0 : i32
    %c0_i32_1 = arith.constant 0 : i32
    return %c0_i32, %c0_i32_0 : i32, i32
  }
  func.func @transform_8(%arg0: i32) -> i32 {
    %c0_i32 = arith.constant 0 : i32
    %c0_i32_0 = arith.constant 0 : i32
    return %c0_i32 : i32
  }
  func.func @transform_9(%arg0: i32) -> (i32, i32) {
    %c0_i32 = arith.constant 0 : i32
    %c0_i32_0 = arith.constant 0 : i32
    %c0_i32_1 = arith.constant 0 : i32
    return %c0_i32, %c0_i32_0 : i32, i32
  }
  func.func @transform_10(%arg0: i32) -> (i32, i32) {
    %c0_i32 = arith.constant 0 : i32
    %c0_i32_0 = arith.constant 0 : i32
    %c0_i32_1 = arith.constant 0 : i32
    return %c0_i32, %c0_i32_0 : i32, i32
  }
  func.func @transform_11(%arg0: i32) -> (i32, i32) {
    %c0_i32 = arith.constant 0 : i32
    %c0_i32_0 = arith.constant 0 : i32
    %c0_i32_1 = arith.constant 0 : i32
    return %c0_i32, %c0_i32_0 : i32, i32
  }
  func.func @transform_12(%arg0: i32) -> (i32, i32) {
    %c0_i32 = arith.constant 0 : i32
    %c0_i32_0 = arith.constant 0 : i32
    %c0_i32_1 = arith.constant 0 : i32
    return %c0_i32, %c0_i32_0 : i32, i32
  }
  func.func @transform_13(%arg0: i32) -> (i32, i32) {
    %c0_i32 = arith.constant 0 : i32
    %c0_i32_0 = arith.constant 0 : i32
    return %arg0, %c0_i32 : i32, i32
  }
}

</mosaic_0001>

<llo_original>
// kernel: tpu_custom_call.1
$region0: #{tpu_custom_call.1}
  #allocation0 [shape = 'u32[]', space=smem, size = 0x4, offset = 0x4, fixed_abs, tag = 'smem constant byte address 0x4 - core index']
  #allocation1 [shape = 'u32[144,128]{1,0:T(1,128)}', space=vmem, size = 0x12000, scoped, tag = 'internal scratch']
  #allocation2 [shape = 'f32[1]{0:T(128)S(6)}', space=smem, size = 0x200, scoped, tag = 'scoped memory for tpu_custom_call.1']
  %s0 = inlined_call_operand.vmem [shape: f32[8,32], index: 0, kind: input, shape index: {}]
  %s1 = inlined_call_operand.vmem [shape: f32[8,32], index: 1, kind: input, shape index: {}]
  %s2 = inlined_call_operand.vmem [shape: f32[32,128], index: 2, kind: input, shape index: {}]
  %s3 = inlined_call_operand.vmem [shape: f32[1,128], index: 3, kind: input, shape index: {}]
  %s4 = inlined_call_operand.vmem [shape: f32[32,128], index: 4, kind: input, shape index: {}]
  %s5 = inlined_call_operand.vmem [shape: f32[1,128], index: 5, kind: input, shape index: {}]
  %s6 = inlined_call_operand.vmem [shape: f32[1,128], index: 6, kind: input, shape index: {}]
  %s7 = inlined_call_operand.vmem [shape: f32[1,128], index: 7, kind: input, shape index: {}]
  %s8 = inlined_call_operand.<no memory space> [shape: f32[1], index: 8, kind: input, shape index: {}]
  %s9 = inlined_call_operand.vmem [shape: f32[128,32], index: 9, kind: input, shape index: {}]
  %s10 = inlined_call_operand.vmem [shape: f32[128,32], index: 10, kind: input, shape index: {}]
  %s11 = inlined_call_operand.vmem [shape: f32[128,32], index: 11, kind: input, shape index: {}]
  %s12 = inlined_call_operand.vmem [shape: f32[1,32], index: 12, kind: input, shape index: {}]
  %s13 = inlined_call_operand.hbm [shape: f32[8,32], index: 13, kind: output, shape index: {}]
  %s14 = sld [smem:[#allocation0]]
  $region62: #{tpu_custom_call.1} parent=0
    _
  %s16 = ssub.s32 1, %s14
  %s17 = scalar_select 0, %s16, %s14
  %18 = sst [smem:[#allocation2]] %s8
  $region1: #{tpu_custom_call.1} parent=0
    #allocation3 [shape = 'u8[4096]{0}', space=vmem, size = 0x1000, scoped, tag = 'output window, operand 0, single buffered']
    #allocation4 [shape = 's32[1]{0}', space=sflag, size = 0x4, scoped, tag = 'scoped memory for tpu_custom_call.1']
    %19 = vsyncpa [#allocation4], 0
    // Predicated region
    $region2: #{tpu_custom_call.1} parent=1 // pred_check
      _
    $region3: #{tpu_custom_call.1} parent=1 // pred_check_branch
      %21 = sbr.rel (0) target = $region5
    $region4: #{tpu_custom_call.1} parent=1 // pred_region
      _
    $region5: #{tpu_custom_call.1} parent=1 // pred_fallthru
      _
    // Predicated region
    $region6: #{tpu_custom_call.1} parent=1 // pred_check
      _
    $region7: #{tpu_custom_call.1} parent=1 // pred_check_branch
      %23 = sbr.rel (0) target = $region9
    $region8: #{tpu_custom_call.1} parent=1 // pred_region
      _
    $region9: #{tpu_custom_call.1} parent=1 // pred_fallthru
      _
    // Predicated region
    $region10: #{tpu_custom_call.1} parent=1 // pred_check
      _
    $region11: #{tpu_custom_call.1} parent=1 // pred_check_branch
      %25 = sbr.rel (0) target = $region13
    $region12: #{tpu_custom_call.1} parent=1 // pred_region
      _
    $region13: #{tpu_custom_call.1} parent=1 // pred_fallthru
      _
    // Predicated region
    $region14: #{tpu_custom_call.1} parent=1 // pred_check
      _
    $region15: #{tpu_custom_call.1} parent=1 // pred_check_branch
      %27 = sbr.rel (0) target = $region17
    $region16: #{tpu_custom_call.1} parent=1 // pred_region
      _
    $region17: #{tpu_custom_call.1} parent=1 // pred_fallthru
      _
    // Predicated region
    $region18: #{tpu_custom_call.1} parent=1 // pred_check
      _
    $region19: #{tpu_custom_call.1} parent=1 // pred_check_branch
      %29 = sbr.rel (0) target = $region21
    $region20: #{tpu_custom_call.1} parent=1 // pred_region
      _
    $region21: #{tpu_custom_call.1} parent=1 // pred_fallthru
      _
    // Predicated region
    $region22: #{tpu_custom_call.1} parent=1 // pred_check
      _
    $region23: #{tpu_custom_call.1} parent=1 // pred_check_branch
      %31 = sbr.rel (0) target = $region25
    $region24: #{tpu_custom_call.1} parent=1 // pred_region
      _
    $region25: #{tpu_custom_call.1} parent=1 // pred_fallthru
      _
    // Predicated region
    $region26: #{tpu_custom_call.1} parent=1 // pred_check
      _
    $region27: #{tpu_custom_call.1} parent=1 // pred_check_branch
      %33 = sbr.rel (0) target = $region29
    $region28: #{tpu_custom_call.1} parent=1 // pred_region
      _
    $region29: #{tpu_custom_call.1} parent=1 // pred_fallthru
      _
    // Predicated region
    $region30: #{tpu_custom_call.1} parent=1 // pred_check
      _
    $region31: #{tpu_custom_call.1} parent=1 // pred_check_branch
      %35 = sbr.rel (0) target = $region33
    $region32: #{tpu_custom_call.1} parent=1 // pred_region
      _
    $region33: #{tpu_custom_call.1} parent=1 // pred_fallthru
      _
    // Predicated region
    $region34: #{tpu_custom_call.1} parent=1 // pred_check
      _
    $region35: #{tpu_custom_call.1} parent=1 // pred_check_branch
      %37 = sbr.rel (0) target = $region37
    $region36: #{tpu_custom_call.1} parent=1 // pred_region
      _
    $region37: #{tpu_custom_call.1} parent=1 // pred_fallthru
      _
    // Predicated region
    $region38: #{tpu_custom_call.1} parent=1 // pred_check
      _
    $region39: #{tpu_custom_call.1} parent=1 // pred_check_branch
      %39 = sbr.rel (0) target = $region41
    $region40: #{tpu_custom_call.1} parent=1 // pred_region
      _
    $region41: #{tpu_custom_call.1} parent=1 // pred_fallthru
      _
    // Predicated region
    $region42: #{tpu_custom_call.1} parent=1 // pred_check
      _
    $region43: #{tpu_custom_call.1} parent=1 // pred_check_branch
      %41 = sbr.rel (0) target = $region45
    $region44: #{tpu_custom_call.1} parent=1 // pred_region
      _
    $region45: #{tpu_custom_call.1} parent=1 // pred_fallthru
      _
    // Predicated region
    $region46: #{tpu_custom_call.1} parent=1 // pred_check
      _
    $region47: #{tpu_custom_call.1} parent=1 // pred_check_branch
      %43 = sbr.rel (0) target = $region49
    $region48: #{tpu_custom_call.1} parent=1 // pred_region
      _
    $region49: #{tpu_custom_call.1} parent=1 // pred_fallthru
      _
    // Predicated region
    $region50: #{tpu_custom_call.1} parent=1 // pred_check
      _
    $region51: #{tpu_custom_call.1} parent=1 // pred_check_branch
      %45 = sbr.rel (0) target = $region53
    $region52: #{tpu_custom_call.1} parent=1 // pred_region
      _
    $region53: #{tpu_custom_call.1} parent=1 // pred_fallthru
      _
    %v46 = vld [vmem:[%s0] sm:$0xff]
    %v47 = vld [vmem:[%s1] sm:$0xff]
    %v48 = vld [vmem:[%s2] sm:$0xff]
    %v49 = vld [vmem:[%s2 + $0x8] sm:$0xff]
    %v50 = vld [vmem:[%s2 + $0x10] sm:$0xff]
    %v51 = vld [vmem:[%s2 + $0x18] sm:$0xff]
    %v52 = vld [vmem:[%s3] sm:$0x1]
    %v54 = vlaneseq
    %v55 = vshrl.u32 %v54, 7
    %v56 = vsub.s32 0, %v55
    %v57 = vrot.slane %v52, %v56
    %vm59 = vcmask 261120
    %v61 = vsel %vm59, %v46, 0
    %63 = vmatprep.subr.mxu0 0.0
    %64 = vmatpush1.msra.mxu0 %v48
    %65 = vmatprep.subr.mxu0 0.0
    %66 = vmatpush1.msra.mxu0 %v49
    %67 = vmatprep.subr.mxu0 0.0
    %68 = vmatpush1.msra.mxu0 %v50
    %69 = vmatprep.subr.mxu0 0.0
    %70 = vmatpush1.msra.mxu0 %v51
    %71 = vmatprep.subr.mxu0 0.0
    %72 = vmatpush1.msra.mxu0 0.0
    %73 = vmatprep.subr.mxu0 0.0
    %74 = vmatpush1.msra.mxu0 0.0
    %75 = vmatprep.subr.mxu0 0.0
    %76 = vmatpush1.msra.mxu0 0.0
    %77 = vmatprep.subr.mxu0 0.0
    %78 = vmatpush1.msra.mxu0 0.0
    %79 = vmatprep.subr.mxu0 0.0
    %80 = vmatpush1.msra.mxu0 0.0
    %81 = vmatprep.subr.mxu0 0.0
    %82 = vmatpush1.msra.mxu0 0.0
    %83 = vmatprep.subr.mxu0 0.0
    %84 = vmatpush1.msra.mxu0 0.0
    %85 = vmatprep.subr.mxu0 0.0
    %86 = vmatpush1.msra.mxu0 0.0
    %87 = vmatprep.subr.mxu0 0.0
    %88 = vmatpush1.msra.mxu0 0.0
    %89 = vmatprep.subr.mxu0 0.0
    %90 = vmatpush1.msra.mxu0 0.0
    %91 = vmatprep.subr.mxu0 0.0
    %92 = vmatpush1.msra.mxu0 0.0
    %93 = vmatprep.subr.mxu0 0.0
    %94 = vmatpush1.msra.mxu0 0.0
    %95 = vmatprep.subr.mxu0 0.0
    %96 = vmatpush1.msra.mxu0 0.0
    %97 = vmatprep.subr.mxu0 0.0
    %98 = vmatpush1.msra.mxu0 0.0
    %99 = vmatprep.subr.mxu0 0.0
    %100 = vmatpush1.msra.mxu0 0.0
    %101 = vmatprep.subr.mxu0 0.0
    %102 = vmatpush1.msra.mxu0 0.0
    %103 = vmatprep.subr.mxu0 0.0
    %104 = vmatpush1.msra.mxu0 0.0
    %105 = vmatprep.subr.mxu0 0.0
    %106 = vmatpush1.msra.mxu0 0.0
    %107 = vmatprep.subr.mxu0 0.0
    %108 = vmatpush1.msra.mxu0 0.0
    %109 = vmatprep.subr.mxu0 0.0
    %110 = vmatpush1.msra.mxu0 0.0
    %111 = vmatprep.subr.mxu0 0.0
    %112 = vmatpush1.msra.mxu0 0.0
    %113 = vmatprep.subr.mxu0 0.0
    %114 = vmatpush1.msra.mxu0 0.0
    %115 = vmatprep.subr.mxu0 0.0
    %116 = vmatpush1.msra.mxu0 0.0
    %117 = vmatprep.subr.mxu0 0.0
    %118 = vmatpush1.msra.mxu0 0.0
    %119 = vmatprep.subr.mxu0 0.0
    %120 = vmatpush1.msra.mxu0 0.0
    %121 = vmatprep.subr.mxu0 0.0
    %122 = vmatpush1.msra.mxu0 0.0
    %123 = vmatprep.subr.mxu0 0.0
    %124 = vmatpush1.msra.mxu0 0.0
    %125 = vmatprep.subr.mxu0 0.0
    %126 = vmatpush1.msra.mxu0 0.0
    %127 = vmatprep.mubr.f32.mxu0 0.0
    %128 = vmatmul.mubr.f32.gmra.mrb[0].mxu0 %v61
    %v129 = vpop.f32.mrb[0].mxu0
    %v130 = vadd.f32 %v57, %v129
    %v131 = vpop.f32.mrb[0].mxu0
    %132 = vdwg.mxu0
    %v133 = vmax.f32 %v130, 0.0
    %v134 = vld [vmem:[%s4] sm:$0xff]
    %v135 = vld [vmem:[%s4 + $0x8] sm:$0xff]
    %v136 = vld [vmem:[%s4 + $0x10] sm:$0xff]
    %v137 = vld [vmem:[%s4 + $0x18] sm:$0xff]
    %v138 = vld [vmem:[%s5] sm:$0x1]
    %v140 = vlaneseq
    %v141 = vshrl.u32 %v140, 7
    %v142 = vsub.s32 0, %v141
    %v143 = vrot.slane %v138, %v142
    %v146 = vsel %vm59, %v47, 0
    %148 = vmatprep.subr.mxu0 0.0
    %149 = vmatpush1.msra.mxu0 %v134
    %150 = vmatprep.subr.mxu0 0.0
    %151 = vmatpush1.msra.mxu0 %v135
    %152 = vmatprep.subr.mxu0 0.0
    %153 = vmatpush1.msra.mxu0 %v136
    %154 = vmatprep.subr.mxu0 0.0
    %155 = vmatpush1.msra.mxu0 %v137
    %156 = vmatprep.subr.mxu0 0.0
    %157 = vmatpush1.msra.mxu0 0.0
    %158 = vmatprep.subr.mxu0 0.0
    %159 = vmatpush1.msra.mxu0 0.0
    %160 = vmatprep.subr.mxu0 0.0
    %161 = vmatpush1.msra.mxu0 0.0
    %162 = vmatprep.subr.mxu0 0.0
    %163 = vmatpush1.msra.mxu0 0.0
    %164 = vmatprep.subr.mxu0 0.0
    %165 = vmatpush1.msra.mxu0 0.0
    %166 = vmatprep.subr.mxu0 0.0
    %167 = vmatpush1.msra.mxu0 0.0
    %168 = vmatprep.subr.mxu0 0.0
    %169 = vmatpush1.msra.mxu0 0.0
    %170 = vmatprep.subr.mxu0 0.0
    %171 = vmatpush1.msra.mxu0 0.0
    %172 = vmatprep.subr.mxu0 0.0
    %173 = vmatpush1.msra.mxu0 0.0
    %174 = vmatprep.subr.mxu0 0.0
    %175 = vmatpush1.msra.mxu0 0.0
    %176 = vmatprep.subr.mxu0 0.0
    %177 = vmatpush1.msra.mxu0 0.0
    %178 = vmatprep.subr.mxu0 0.0
    %179 = vmatpush1.msra.mxu0 0.0
    %180 = vmatprep.subr.mxu0 0.0
    %181 = vmatpush1.msra.mxu0 0.0
    %182 = vmatprep.subr.mxu0 0.0
    %183 = vmatpush1.msra.mxu0 0.0
    %184 = vmatprep.subr.mxu0 0.0
    %185 = vmatpush1.msra.mxu0 0.0
    %186 = vmatprep.subr.mxu0 0.0
    %187 = vmatpush1.msra.mxu0 0.0
    %188 = vmatprep.subr.mxu0 0.0
    %189 = vmatpush1.msra.mxu0 0.0
    %190 = vmatprep.subr.mxu0 0.0
    %191 = vmatpush1.msra.mxu0 0.0
    %192 = vmatprep.subr.mxu0 0.0
    %193 = vmatpush1.msra.mxu0 0.0
    %194 = vmatprep.subr.mxu0 0.0
    %195 = vmatpush1.msra.mxu0 0.0
    %196 = vmatprep.subr.mxu0 0.0
    %197 = vmatpush1.msra.mxu0 0.0
    %198 = vmatprep.subr.mxu0 0.0
    %199 = vmatpush1.msra.mxu0 0.0
    %200 = vmatprep.subr.mxu0 0.0
    %201 = vmatpush1.msra.mxu0 0.0
    %202 = vmatprep.subr.mxu0 0.0
    %203 = vmatpush1.msra.mxu0 0.0
    %204 = vmatprep.subr.mxu0 0.0
    %205 = vmatpush1.msra.mxu0 0.0
    %206 = vmatprep.subr.mxu0 0.0
    %207 = vmatpush1.msra.mxu0 0.0
    %208 = vmatprep.subr.mxu0 0.0
    %209 = vmatpush1.msra.mxu0 0.0
    %210 = vmatprep.subr.mxu0 0.0
    %211 = vmatpush1.msra.mxu0 0.0
    %212 = vmatprep.mubr.f32.mxu0 0.0
    %213 = vmatmul.mubr.f32.gmra.mrb[0].mxu0 %v146
    %v214 = vpop.f32.mrb[0].mxu0
    %v215 = vadd.f32 %v143, %v214
    %v216 = vpop.f32.mrb[0].mxu0
    %217 = vdwg.mxu0
    %v218 = vmax.f32 %v215, 0.0
    %v219 = vld [vmem:[%s6] sm:$0x1]
    %v221 = vlaneseq
    %v222 = vshrl.u32 %v221, 7
    %v223 = vsub.s32 0, %v222
    %v224 = vrot.slane %v219, %v223
    %v226 = vmul.f32 %v133, %v224
    %v227 = vld [vmem:[%s7] sm:$0x1]
    %v229 = vlaneseq
    %v230 = vshrl.u32 %v229, 7
    %v231 = vsub.s32 0, %v230
    %v232 = vrot.slane %v227, %v231
    %v234 = vmul.f32 %v218, %v232
    %v235 = vadd.f32 %v226, %v234
    %236 = vadd.xlane.f32.xlu0 %v235
    %v237 = vpop.xlane.xlu0 %236
    %s238 = sld [smem:[#allocation2]]
    %v239 = vstv %s238
    %v240 = vadd.f32 %v237, %v239
    %v241 = vxor.u32 %v240, 2147483648
    %v242 = vmul.f32 %v241, 1.442695
    %v243 = vpow.pop %v242
    %v244 = vadd.f32 %v243, 1.0
    %v245 = vrcp.pop %v244
    %v246 = vmul.f32 1.0, %v245
    %v247 = vsub.f32 %v133, %v218
    %v248 = vmul.f32 %v246, %v247
    %v249 = vadd.f32 %v218, %v248
    %v250 = vld [vmem:[%s9] sm:$0xff]
    %v251 = vld [vmem:[%s9 + $0x8] sm:$0xff]
    %v252 = vld [vmem:[%s9 + $0x10] sm:$0xff]
    %v253 = vld [vmem:[%s9 + $0x18] sm:$0xff]
    %v254 = vld [vmem:[%s9 + $0x20] sm:$0xff]
    %v255 = vld [vmem:[%s9 + $0x28] sm:$0xff]
    %v256 = vld [vmem:[%s9 + $0x30] sm:$0xff]
    %v257 = vld [vmem:[%s9 + $0x38] sm:$0xff]
    %v258 = vld [vmem:[%s9 + $0x40] sm:$0xff]
    %v259 = vld [vmem:[%s9 + $0x48] sm:$0xff]
    %v260 = vld [vmem:[%s9 + $0x50] sm:$0xff]
    %v261 = vld [vmem:[%s9 + $0x58] sm:$0xff]
    %v262 = vld [vmem:[%s9 + $0x60] sm:$0xff]
    %v263 = vld [vmem:[%s9 + $0x68] sm:$0xff]
    %v264 = vld [vmem:[%s9 + $0x70] sm:$0xff]
    %v265 = vld [vmem:[%s9 + $0x78] sm:$0xff]
    %v266 = vld [vmem:[%s10] sm:$0xff]
    %v267 = vld [vmem:[%s10 + $0x8] sm:$0xff]
    %v268 = vld [vmem:[%s10 + $0x10] sm:$0xff]
    %v269 = vld [vmem:[%s10 + $0x18] sm:$0xff]
    %v270 = vld [vmem:[%s10 + $0x20] sm:$0xff]
    %v271 = vld [vmem:[%s10 + $0x28] sm:$0xff]
    %v272 = vld [vmem:[%s10 + $0x30] sm:$0xff]
    %v273 = vld [vmem:[%s10 + $0x38] sm:$0xff]
    %v274 = vld [vmem:[%s10 + $0x40] sm:$0xff]
    %v275 = vld [vmem:[%s10 + $0x48] sm:$0xff]
    %v276 = vld [vmem:[%s10 + $0x50] sm:$0xff]
    %v277 = vld [vmem:[%s10 + $0x58] sm:$0xff]
    %v278 = vld [vmem:[%s10 + $0x60] sm:$0xff]
    %v279 = vld [vmem:[%s10 + $0x68] sm:$0xff]
    %v280 = vld [vmem:[%s10 + $0x70] sm:$0xff]
    %v281 = vld [vmem:[%s10 + $0x78] sm:$0xff]
    %282 = vmatprep.subr.mxu0 0.0
    %283 = vmatpush1.msra.mxu0 %v266
    %284 = vmatprep.subr.mxu0 0.0
    %285 = vmatpush1.msra.mxu0 %v267
    %286 = vmatprep.subr.mxu0 0.0
    %287 = vmatpush1.msra.mxu0 %v268
    %288 = vmatprep.subr.mxu0 0.0
    %289 = vmatpush1.msra.mxu0 %v269
    %290 = vmatprep.subr.mxu0 0.0
    %291 = vmatpush1.msra.mxu0 %v270
    %292 = vmatprep.subr.mxu0 0.0
    %293 = vmatpush1.msra.mxu0 %v271
    %294 = vmatprep.subr.mxu0 0.0
    %295 = vmatpush1.msra.mxu0 %v272
    %296 = vmatprep.subr.mxu0 0.0
    %297 = vmatpush1.msra.mxu0 %v273
    %298 = vmatprep.subr.mxu0 0.0
    %299 = vmatpush1.msra.mxu0 %v274
    %300 = vmatprep.subr.mxu0 0.0
    %301 = vmatpush1.msra.mxu0 %v275
    %302 = vmatprep.subr.mxu0 0.0
    %303 = vmatpush1.msra.mxu0 %v276
    %304 = vmatprep.subr.mxu0 0.0
    %305 = vmatpush1.msra.mxu0 %v277
    %306 = vmatprep.subr.mxu0 0.0
    %307 = vmatpush1.msra.mxu0 %v278
    %308 = vmatprep.subr.mxu0 0.0
    %309 = vmatpush1.msra.mxu0 %v279
    %310 = vmatprep.subr.mxu0 0.0
    %311 = vmatpush1.msra.mxu0 %v280
    %312 = vmatprep.subr.mxu0 0.0
    %313 = vmatpush1.msra.mxu0 %v281
    %314 = vmatprep.subr.mxu0 0.0
    %315 = vmatpush1.msra.mxu0 0.0
    %316 = vmatprep.subr.mxu0 0.0
    %317 = vmatpush1.msra.mxu0 0.0
    %318 = vmatprep.subr.mxu0 0.0
    %319 = vmatpush1.msra.mxu0 0.0
    %320 = vmatprep.subr.mxu0 0.0
    %321 = vmatpush1.msra.mxu0 0.0
    %322 = vmatprep.subr.mxu0 0.0
    %323 = vmatpush1.msra.mxu0 0.0
    %324 = vmatprep.subr.mxu0 0.0
    %325 = vmatpush1.msra.mxu0 0.0
    %326 = vmatprep.subr.mxu0 0.0
    %327 = vmatpush1.msra.mxu0 0.0
    %328 = vmatprep.subr.mxu0 0.0
    %329 = vmatpush1.msra.mxu0 0.0
    %330 = vmatprep.subr.mxu0 0.0
    %331 = vmatpush1.msra.mxu0 0.0
    %332 = vmatprep.subr.mxu0 0.0
    %333 = vmatpush1.msra.mxu0 0.0
    %334 = vmatprep.subr.mxu0 0.0
    %335 = vmatpush1.msra.mxu0 0.0
    %336 = vmatprep.subr.mxu0 0.0
    %337 = vmatpush1.msra.mxu0 0.0
    %338 = vmatprep.subr.mxu0 0.0
    %339 = vmatpush1.msra.mxu0 0.0
    %340 = vmatprep.subr.mxu0 0.0
    %341 = vmatpush1.msra.mxu0 0.0
    %342 = vmatprep.subr.mxu0 0.0
    %343 = vmatpush1.msra.mxu0 0.0
    %344 = vmatprep.subr.mxu0 0.0
    %345 = vmatpush1.msra.mxu0 0.0
    %346 = vmatprep.mubr.f32.mxu0 0.0
    %347 = vmatmul.mubr.f32.gmra.mrb[0].mxu0 %v133
    %v348 = vpop.f32.mrb[0].mxu0
    %v349 = vadd.f32 0.0, %v348
    %v350 = vpop.f32.mrb[0].mxu0
    %351 = vdwg.mxu0
    %352 = vmatprep.subr.mxu0 0.0
    %353 = vmatpush1.msra.mxu0 %v250
    %354 = vmatprep.subr.mxu0 0.0
    %355 = vmatpush1.msra.mxu0 %v251
    %356 = vmatprep.subr.mxu0 0.0
    %357 = vmatpush1.msra.mxu0 %v252
    %358 = vmatprep.subr.mxu0 0.0
    %359 = vmatpush1.msra.mxu0 %v253
    %360 = vmatprep.subr.mxu0 0.0
    %361 = vmatpush1.msra.mxu0 %v254
    %362 = vmatprep.subr.mxu0 0.0
    %363 = vmatpush1.msra.mxu0 %v255
    %364 = vmatprep.subr.mxu0 0.0
    %365 = vmatpush1.msra.mxu0 %v256
    %366 = vmatprep.subr.mxu0 0.0
    %367 = vmatpush1.msra.mxu0 %v257
    %368 = vmatprep.subr.mxu0 0.0
    %369 = vmatpush1.msra.mxu0 %v258
    %370 = vmatprep.subr.mxu0 0.0
    %371 = vmatpush1.msra.mxu0 %v259
    %372 = vmatprep.subr.mxu0 0.0
    %373 = vmatpush1.msra.mxu0 %v260
    %374 = vmatprep.subr.mxu0 0.0
    %375 = vmatpush1.msra.mxu0 %v261
    %376 = vmatprep.subr.mxu0 0.0
    %377 = vmatpush1.msra.mxu0 %v262
    %378 = vmatprep.subr.mxu0 0.0
    %379 = vmatpush1.msra.mxu0 %v263
    %380 = vmatprep.subr.mxu0 0.0
    %381 = vmatpush1.msra.mxu0 %v264
    %382 = vmatprep.subr.mxu0 0.0
    %383 = vmatpush1.msra.mxu0 %v265
    %384 = vmatprep.subr.mxu0 0.0
    %385 = vmatpush1.msra.mxu0 0.0
    %386 = vmatprep.subr.mxu0 0.0
    %387 = vmatpush1.msra.mxu0 0.0
    %388 = vmatprep.subr.mxu0 0.0
    %389 = vmatpush1.msra.mxu0 0.0
    %390 = vmatprep.subr.mxu0 0.0
    %391 = vmatpush1.msra.mxu0 0.0
    %392 = vmatprep.subr.mxu0 0.0
    %393 = vmatpush1.msra.mxu0 0.0
    %394 = vmatprep.subr.mxu0 0.0
    %395 = vmatpush1.msra.mxu0 0.0
    %396 = vmatprep.subr.mxu0 0.0
    %397 = vmatpush1.msra.mxu0 0.0
    %398 = vmatprep.subr.mxu0 0.0
    %399 = vmatpush1.msra.mxu0 0.0
    %400 = vmatprep.subr.mxu0 0.0
    %401 = vmatpush1.msra.mxu0 0.0
    %402 = vmatprep.subr.mxu0 0.0
    %403 = vmatpush1.msra.mxu0 0.0
    %404 = vmatprep.subr.mxu0 0.0
    %405 = vmatpush1.msra.mxu0 0.0
    %406 = vmatprep.subr.mxu0 0.0
    %407 = vmatpush1.msra.mxu0 0.0
    %408 = vmatprep.subr.mxu0 0.0
    %409 = vmatpush1.msra.mxu0 0.0
    %410 = vmatprep.subr.mxu0 0.0
    %411 = vmatpush1.msra.mxu0 0.0
    %412 = vmatprep.subr.mxu0 0.0
    %413 = vmatpush1.msra.mxu0 0.0
    %414 = vmatprep.subr.mxu0 0.0
    %415 = vmatpush1.msra.mxu0 0.0
    %416 = vmatprep.mubr.f32.mxu0 0.0
    %417 = vmatmul.mubr.f32.gmra.mrb[0].mxu0 %v249
    %v418 = vpop.f32.mrb[0].mxu0
    %v419 = vadd.f32 %v349, %v418
    %v420 = vpop.f32.mrb[0].mxu0
    %421 = vdwg.mxu0
    %v422 = vld [vmem:[%s11] sm:$0xff]
    %v423 = vld [vmem:[%s11 + $0x8] sm:$0xff]
    %v424 = vld [vmem:[%s11 + $0x10] sm:$0xff]
    %v425 = vld [vmem:[%s11 + $0x18] sm:$0xff]
    %v426 = vld [vmem:[%s11 + $0x20] sm:$0xff]
    %v427 = vld [vmem:[%s11 + $0x28] sm:$0xff]
    %v428 = vld [vmem:[%s11 + $0x30] sm:$0xff]
    %v429 = vld [vmem:[%s11 + $0x38] sm:$0xff]
    %v430 = vld [vmem:[%s11 + $0x40] sm:$0xff]
    %v431 = vld [vmem:[%s11 + $0x48] sm:$0xff]
    %v432 = vld [vmem:[%s11 + $0x50] sm:$0xff]
    %v433 = vld [vmem:[%s11 + $0x58] sm:$0xff]
    %v434 = vld [vmem:[%s11 + $0x60] sm:$0xff]
    %v435 = vld [vmem:[%s11 + $0x68] sm:$0xff]
    %v436 = vld [vmem:[%s11 + $0x70] sm:$0xff]
    %v437 = vld [vmem:[%s11 + $0x78] sm:$0xff]
    %438 = vmatprep.subr.mxu0 0.0
    %439 = vmatpush1.msra.mxu0 %v422
    %440 = vmatprep.subr.mxu0 0.0
    %441 = vmatpush1.msra.mxu0 %v423
    %442 = vmatprep.subr.mxu0 0.0
    %443 = vmatpush1.msra.mxu0 %v424
    %444 = vmatprep.subr.mxu0 0.0
    %445 = vmatpush1.msra.mxu0 %v425
    %446 = vmatprep.subr.mxu0 0.0
    %447 = vmatpush1.msra.mxu0 %v426
    %448 = vmatprep.subr.mxu0 0.0
    %449 = vmatpush1.msra.mxu0 %v427
    %450 = vmatprep.subr.mxu0 0.0
    %451 = vmatpush1.msra.mxu0 %v428
    %452 = vmatprep.subr.mxu0 0.0
    %453 = vmatpush1.msra.mxu0 %v429
    %454 = vmatprep.subr.mxu0 0.0
    %455 = vmatpush1.msra.mxu0 %v430
    %456 = vmatprep.subr.mxu0 0.0
    %457 = vmatpush1.msra.mxu0 %v431
    %458 = vmatprep.subr.mxu0 0.0
    %459 = vmatpush1.msra.mxu0 %v432
    %460 = vmatprep.subr.mxu0 0.0
    %461 = vmatpush1.msra.mxu0 %v433
    %462 = vmatprep.subr.mxu0 0.0
    %463 = vmatpush1.msra.mxu0 %v434
    %464 = vmatprep.subr.mxu0 0.0
    %465 = vmatpush1.msra.mxu0 %v435
    %466 = vmatprep.subr.mxu0 0.0
    %467 = vmatpush1.msra.mxu0 %v436
    %468 = vmatprep.subr.mxu0 0.0
    %469 = vmatpush1.msra.mxu0 %v437
    %470 = vmatprep.subr.mxu0 0.0
    %471 = vmatpush1.msra.mxu0 0.0
    %472 = vmatprep.subr.mxu0 0.0
    %473 = vmatpush1.msra.mxu0 0.0
    %474 = vmatprep.subr.mxu0 0.0
    %475 = vmatpush1.msra.mxu0 0.0
    %476 = vmatprep.subr.mxu0 0.0
    %477 = vmatpush1.msra.mxu0 0.0
    %478 = vmatprep.subr.mxu0 0.0
    %479 = vmatpush1.msra.mxu0 0.0
    %480 = vmatprep.subr.mxu0 0.0
    %481 = vmatpush1.msra.mxu0 0.0
    %482 = vmatprep.subr.mxu0 0.0
    %483 = vmatpush1.msra.mxu0 0.0
    %484 = vmatprep.subr.mxu0 0.0
    %485 = vmatpush1.msra.mxu0 0.0
    %486 = vmatprep.subr.mxu0 0.0
    %487 = vmatpush1.msra.mxu0 0.0
    %488 = vmatprep.subr.mxu0 0.0
    %489 = vmatpush1.msra.mxu0 0.0
    %490 = vmatprep.subr.mxu0 0.0
    %491 = vmatpush1.msra.mxu0 0.0
    %492 = vmatprep.subr.mxu0 0.0
    %493 = vmatpush1.msra.mxu0 0.0
    %494 = vmatprep.subr.mxu0 0.0
    %495 = vmatpush1.msra.mxu0 0.0
    %496 = vmatprep.subr.mxu0 0.0
    %497 = vmatpush1.msra.mxu0 0.0
    %498 = vmatprep.subr.mxu0 0.0
    %499 = vmatpush1.msra.mxu0 0.0
    %500 = vmatprep.subr.mxu0 0.0
    %501 = vmatpush1.msra.mxu0 0.0
    %502 = vmatprep.mubr.f32.mxu0 0.0
    %503 = vmatmul.mubr.f32.gmra.mrb[0].mxu0 %v218
    %v504 = vpop.f32.mrb[0].mxu0
    %v505 = vadd.f32 0.0, %v504
    %v506 = vpop.f32.mrb[0].mxu0
    %507 = vdwg.mxu0
    %v508 = vadd.f32 %v419, %v505
    %v509 = vld [vmem:[%s12] sm:$0x1]
    %v511 = vlaneseq
    %v512 = vshrl.u32 %v511, 7
    %v513 = vsub.s32 0, %v512
    %v514 = vrot.slane %v509, %v513
    %v516 = vadd.f32 %v508, %v514
    %v517 = vmul.f32 %v516, %v516
    %v518 = vsel %vm59, %v517, 0.0
    %519 = vadd.xlane.f32.xlu0 %v518
    %v520 = vpop.xlane.xlu0 %519
    %v521 = vmax.f32 %v520, 1e-24
    %v522 = vrsqrt.pop %v521
    %v523 = vmul.f32 %v516, %v522
    %524 = vst.msk [vmem:[#allocation3] sm:$0xff] %vm59, %v523
    // Predicated region
    $region54: #{tpu_custom_call.1} parent=1 // pred_check
      _
    $region55: #{tpu_custom_call.1} parent=1 // pred_check_branch
      %526 = sbr.rel (0) target = $region57
    $region56: #{tpu_custom_call.1} parent=1 // pred_region
      %s528 = ssub.s32 128, 128
      %529 = vsyncadd [#allocation4], %s528
      %s531 = sshll.u32 [#allocation3], 4
      %s532 = int_to_ptr.vmem [resolvable:$true] %s531
      %534 = dma.vmem_to_hbm [thread:$0]  %s532, 128, %s13, [#allocation4]
    $region57: #{tpu_custom_call.1} parent=1 // pred_fallthru
      _
    // Predicated region
    $region58: #{tpu_custom_call.1} parent=1 // pred_check
      _
    $region59: #{tpu_custom_call.1} parent=1 // pred_check_branch
      %536 = sbr.rel (0) target = $region61
    $region60: #{tpu_custom_call.1} parent=1 // pred_region
      %537 = dma.done [#allocation4], 128
    $region61: #{tpu_custom_call.1} parent=1 // pred_fallthru
      _
    %538 = vsyncpa [#allocation4], 1

</llo_original>
